<compile_context>
chip_gen: v7x
topology: tpu7x:2x2x1
jax: 0.10.0
libtpu: 0.0.40
codegen_flags: <defaults>
</compile_context>

<pallas_src>
import jax
import jax.numpy as jnp
from jax.experimental import pallas as pl
from jax.experimental.pallas import tpu as pltpu


def _round_up(x, m):
    return ((x + m - 1) // m) * m


# ---------------------------------------------------------------------------
# Pass 1: per-edge message MLP, computed ONCE per edge (grid over edge tiles).
# Everything is [feature, edge] so the edge axis is the lane axis.
# ---------------------------------------------------------------------------
def _message_kernel(mT_ref, w1T_ref, b1_ref, w2T_ref, b2_ref, msgT_ref):
    z1 = jnp.dot(w1T_ref[...], mT_ref[...],
                 preferred_element_type=jnp.float32) + b1_ref[...]      # [H_mid, te]
    z1 = jnp.maximum(z1, 0.0).astype(jnp.bfloat16)
    msgT_ref[...] = jnp.dot(w2T_ref[...], z1,
                            preferred_element_type=jnp.float32) + b2_ref[...]


# ---------------------------------------------------------------------------
# Pass 2: scatter-max aggregation over edges pre-sorted by target.
# grid = (node_tiles, edge_tiles); each node tile only processes the edge
# tiles that contain its own incoming edges (scalar-prefetched ranges).
# ---------------------------------------------------------------------------
def _aggregate_kernel(first_tile_ref, num_tiles_ref,      # scalar prefetch (SMEM)
                      msgT_ref, tgt_ref, out_ref, acc_ref):
    i = pl.program_id(0)
    e = pl.program_id(1)

    @pl.when(e == 0)
    def _():
        acc_ref[...] = jnp.full_like(acc_ref, -jnp.inf)

    # Only edge tiles that actually contain edges targeting this node tile.
    @pl.when(e < num_tiles_ref[i])
    def _():
        tn = acc_ref.shape[0]
        te = tgt_ref.shape[1]
        node_ids = i * tn + jax.lax.broadcasted_iota(jnp.int32, (tn, te), 0)
        mask = node_ids == tgt_ref[...]                                 # [tn, te]
        # Lane-dense masked max: edge axis (multiple of 128) on lanes,
        # reduction over the last axis goes to the XLU cross-lane reduce.
        gated = jnp.where(mask[:, None, :], msgT_ref[...][None, :, :],
                          -jnp.inf)                                     # [tn, H, te]
        acc_ref[...] = jnp.maximum(acc_ref[...], jnp.max(gated, axis=-1))

    @pl.when(e == pl.num_programs(1) - 1)
    def _():
        a = acc_ref[...]
        # -inf sentinel == "no incoming edge" -> 0 (PyG zero-init scatter_max)
        out_ref[...] = jnp.where(a == -jnp.inf, 0.0, a)


def pallas_propagate(h, src, tgt, ef, w1, b1, w2, b2, *, tile_n=64, tile_e=128):
    """One MessagePassing.propagate with aggr='max' (2-pass Pallas)."""
    N = h.shape[0]
    E = src.shape[0]
    K = w1.shape[0]            # 2*F + edge_feat_dim
    H_mid = w1.shape[1]
    H_out = w2.shape[1]

    # ---- sort edges by target so each node tile's incoming edges form a
    #      contiguous edge-tile range (structural fix from perf review) ------
    order = jnp.argsort(tgt)
    tgt_s = jnp.take(tgt, order).astype(jnp.int32)
    src_s = jnp.take(src, order)
    ef_s = jnp.take(ef, order, axis=0)

    # ---- tiling -------------------------------------------------------------
    # NOTE: sweep tile_e in {128, 256} per generation; keep tn*H*te*4 modest
    # (gated intermediate) so it stays inside v7x's smaller VMEM.
    te = min(tile_e, _round_up(E, 128))
    Ep = _round_up(E, te)
    n_e_tiles = Ep // te

    tn = min(tile_n, _round_up(N, 8))
    if _round_up(N, tn) // tn < 2 and N >= 16:
        # v7x: give the "parallel" node axis at least 2 tiles (2 TCs/chip).
        tn = _round_up((N + 1) // 2, 8)
    Np = _round_up(N, tn)
    n_n_tiles = Np // tn

    # ---- build the transposed bf16 edge-message operand [Kp, Ep] -----------
    # TODO(synk): gather h rows in-kernel (scalar-prefetched src/tgt + manual
    # DMA from an ANY-space h) so only the [H_out, E] messages ever hit HBM;
    # kept as one XLA gather here — but it is now read once, in bf16, instead
    # of node_tiles times in f32.
    Kp = _round_up(K, 16)                       # bf16 sublane packing
    m = jnp.concatenate([jnp.take(h, tgt_s, axis=0),      # h_i (target)
                         jnp.take(h, src_s, axis=0),      # h_j (source)
                         ef_s], axis=1).astype(jnp.bfloat16)            # [E, K]
    mT = jnp.pad(m.T, ((0, Kp - K), (0, Ep - E)))                        # [Kp, Ep]
    w1T = jnp.pad(w1.T.astype(jnp.bfloat16), ((0, 0), (0, Kp - K)))      # [H_mid, Kp]
    w2T = w2.T.astype(jnp.bfloat16)                                      # [H_out, H_mid]
    b1c = b1.reshape(-1, 1).astype(jnp.float32)
    b2c = b2.reshape(-1, 1).astype(jnp.float32)

    # ---- pass 1: messages, once per edge ------------------------------------
    msgT = pl.pallas_call(
        _message_kernel,
        out_shape=jax.ShapeDtypeStruct((H_out, Ep), jnp.float32),
        grid_spec=pltpu.PrefetchScalarGridSpec(
            num_scalar_prefetch=0,
            grid=(n_e_tiles,),
            in_specs=[
                pl.BlockSpec((Kp, te), lambda e: (0, e)),        # edge operand
                pl.BlockSpec((H_mid, Kp), lambda e: (0, 0)),     # w1^T
                pl.BlockSpec((H_mid, 1), lambda e: (0, 0)),      # b1
                pl.BlockSpec((H_out, H_mid), lambda e: (0, 0)),  # w2^T
                pl.BlockSpec((H_out, 1), lambda e: (0, 0)),      # b2
            ],
            out_specs=pl.BlockSpec((H_out, te), lambda e: (0, e)),
        ),
        compiler_params=pltpu.CompilerParams(dimension_semantics=("parallel",)),
    )(mT, w1T, b1c, w2T, b2c)

    # ---- per-node-tile edge-tile ranges (scalar prefetch) -------------------
    tgt_p = jnp.pad(tgt_s, (0, Ep - E), constant_values=Np)  # sentinel never matches
    node_lo = jnp.arange(n_n_tiles, dtype=jnp.int32) * tn
    start_e = jnp.searchsorted(tgt_p, node_lo, side='left').astype(jnp.int32)
    end_e = jnp.searchsorted(tgt_p, node_lo + tn, side='left').astype(jnp.int32)
    first_tile = jnp.minimum(start_e // te, n_e_tiles - 1).astype(jnp.int32)
    has_edges = end_e > start_e
    last_tile = jnp.where(has_edges, (end_e - 1) // te, first_tile)
    num_tiles = jnp.where(has_edges, last_tile - first_tile + 1, 0).astype(jnp.int32)

    tgt_2d = tgt_p.reshape(1, Ep)

    def _edge_block(i, e, ft, nt):
        # Data-dependent edge-tile index; frozen once e passes this node
        # tile's range so the pipeline re-sees the same block (no new DMA).
        return (0, ft[i] + jnp.minimum(e, jnp.maximum(nt[i] - 1, 0)))

    # ---- pass 2: max aggregation --------------------------------------------
    out = pl.pallas_call(
        _aggregate_kernel,
        out_shape=jax.ShapeDtypeStruct((Np, H_out), jnp.float32),
        grid_spec=pltpu.PrefetchScalarGridSpec(
            num_scalar_prefetch=2,
            grid=(n_n_tiles, n_e_tiles),
            in_specs=[
                pl.BlockSpec((H_out, te), _edge_block),   # messages (transposed)
                pl.BlockSpec((1, te), _edge_block),       # sorted target ids
            ],
            out_specs=pl.BlockSpec((tn, H_out), lambda i, e, ft, nt: (i, 0)),
            scratch_shapes=[pltpu.VMEM((tn, H_out), jnp.float32)],
        ),
        compiler_params=pltpu.CompilerParams(
            dimension_semantics=("parallel", "arbitrary")),
    )(first_tile, num_tiles, msgT, tgt_2d)
    return out[:N]


def init_params(key, in_features, edge_feat_dim, hidden, out_features):
    """Deterministic synthetic parameters (shapes match the torch module)."""
    ks = jax.random.split(key, 5)

    def lin(k, fi, fo):
        kw, kb = jax.random.split(k)
        w = jax.random.normal(kw, (fi, fo), jnp.float32) * 0.1
        b = jax.random.normal(kb, (fo,), jnp.float32) * 0.1
        return w, b

    p = {}
    # mlp1: Linear(2*in + edge, hidden), ReLU, Linear(hidden, hidden)
    p['mlp1_w1'], p['mlp1_b1'] = lin(ks[0], 2 * in_features + edge_feat_dim, hidden)
    p['mlp1_w2'], p['mlp1_b2'] = lin(ks[1], hidden, hidden)
    # mlp2: Linear(2*hidden + edge, hidden), ReLU, Linear(hidden, hidden)
    p['mlp2_w1'], p['mlp2_b1'] = lin(ks[2], 2 * hidden + edge_feat_dim, hidden)
    p['mlp2_w2'], p['mlp2_b2'] = lin(ks[3], hidden, hidden)
    # regression: Linear(hidden, out_features)
    p['reg_w'], p['reg_b'] = lin(ks[4], hidden, out_features)
    return p


def graphnet_forward(h, edge_index, edge_features, params, num_cables):
    ef0 = edge_features[0::2].reshape(-1, 3)
    ef1 = edge_features[1::2].reshape(-1, 3)
    h = pallas_propagate(h, edge_index[0], edge_index[1], ef0,
                         params['mlp1_w1'], params['mlp1_b1'],
                         params['mlp1_w2'], params['mlp1_b2'])
    h = pallas_propagate(h, edge_index[2], edge_index[3], ef1,
                         params['mlp2_w1'], params['mlp2_b1'],
                         params['mlp2_w2'], params['mlp2_b2'])
    sel = h[num_cables + 1::num_cables + 2]
    # Tiny regression head stays in XLA (a [2,2] pallas_call is pure overhead).
    return sel @ params['reg_w'] + params['reg_b']


def ref_forward(h, edge_index, edge_features, params, num_cables,
                mlp_dtype=jnp.float32):
    """Pure-JAX reference mirroring PyTorch/PyG semantics.

    mlp_dtype lets the reference mirror the kernel's bf16 operand cast of the
    message MLP (deliberate perf choice); aggregation / head stay f32.
    """
    N = h.shape[0]

    def prop(h, src, tgt, ef, w1, b1, w2, b2):
        m = jnp.concatenate([h[tgt], h[src], ef], axis=1).astype(mlp_dtype)
        z1 = jnp.dot(m, w1.astype(mlp_dtype),
                     preferred_element_type=jnp.float32) + b1
        z1 = jnp.maximum(z1, 0.0).astype(mlp_dtype)
        msg = jnp.dot(z1, w2.astype(mlp_dtype),
                      preferred_element_type=jnp.float32) + b2
        agg = jax.ops.segment_max(msg, tgt, num_segments=N)
        cnt = jax.ops.segment_sum(jnp.ones((tgt.shape[0], 1), jnp.float32),
                                  tgt, num_segments=N)
        return jnp.where(cnt > 0, agg, 0.0)

    ef0 = edge_features[0::2].reshape(-1, 3)
    ef1 = edge_features[1::2].reshape(-1, 3)
    h = prop(h, edge_index[0], edge_index[1], ef0,
             params['mlp1_w1'], params['mlp1_b1'],
             params['mlp1_w2'], params['mlp1_b2'])
    h = prop(h, edge_index[2], edge_index[3], ef1,
             params['mlp2_w1'], params['mlp2_b1'],
             params['mlp2_w2'], params['mlp2_b2'])
    sel = h[num_cables + 1::num_cables + 2]
    return sel @ params['reg_w'] + params['reg_b']


if __name__ == "__main__":
    key = jax.random.PRNGKey(0)
    in_features, edge_feat_dim, hidden, out_features = 4, 3, 32, 2
    num_cables = 2          # -> group size num_cables + 2 = 4
    N = 8                   # 2 groups of 4 nodes
    E = 12                  # edges per edge set (two sets -> 2*E edge features)

    k_h, k_e, k_ef, k_p = jax.random.split(key, 4)
    h = jax.random.normal(k_h, (N, in_features), jnp.float32)
    edge_index = jax.random.randint(k_e, (4, E), 0, N, dtype=jnp.int32)
    edge_features = jax.random.normal(k_ef, (2 * E, edge_feat_dim), jnp.float32)
    params = init_params(k_p, in_features, edge_feat_dim, hidden, out_features)

    out = graphnet_forward(h, edge_index, edge_features, params, num_cables)
    out = jax.block_until_ready(out)
    assert out.shape == (N // (num_cables + 2), out_features), out.shape

    # Reference mirrors the kernel's bf16 message-MLP operands (f32 accumulate),
    # so the comparison isolates kernel logic from the deliberate dtype choice.
    ref = ref_forward(h, edge_index, edge_features, params, num_cables,
                      mlp_dtype=jnp.bfloat16)
    if not jnp.allclose(out, ref, atol=2e-3, rtol=2e-3):
        raise AssertionError(f"Pallas output mismatch vs reference:\n{out}\n{ref}")
    print("KERNEL_OK")
</pallas_src>

<mosaic_0001>
module attributes {stable_mosaic.version = 11 : i64} {
  func.func @_message_kernel(%arg0: i32, %arg1: memref<16x128xbf16, #tpu.memory_space<vmem>>, %arg2: memref<32x16xbf16, #tpu.memory_space<vmem>>, %arg3: memref<32x1xf32, #tpu.memory_space<vmem>>, %arg4: memref<32x32xbf16, #tpu.memory_space<vmem>>, %arg5: memref<32x1xf32, #tpu.memory_space<vmem>>, %arg6: memref<32x128xf32, #tpu.memory_space<vmem>>) attributes {dimension_semantics = [#tpu.dimension_semantics<parallel>], iteration_bounds = array<i64: 1>, scalar_prefetch = 0 : i64, scratch_operands = 0 : i64, tpu.core_type = #tpu.core_type<tc>, window_params = [{transform_indices = @transform_0, window_bounds = array<i64: 16, 128>}, {pipeline_mode = #tpu.pipeline_mode<synchronous>, transform_indices = @transform_1, window_bounds = array<i64: 32, 16>}, {pipeline_mode = #tpu.pipeline_mode<synchronous>, transform_indices = @transform_2, window_bounds = array<i64: 32, 1>}, {pipeline_mode = #tpu.pipeline_mode<synchronous>, transform_indices = @transform_3, window_bounds = array<i64: 32, 32>}, {pipeline_mode = #tpu.pipeline_mode<synchronous>, transform_indices = @transform_4, window_bounds = array<i64: 32, 1>}, {transform_indices = @transform_5, window_bounds = array<i64: 32, 128>}]} {
    %c0 = arith.constant 0 : index
    %c0_0 = arith.constant 0 : index
    %0 = vector.load %arg2[%c0, %c0_0] : memref<32x16xbf16, #tpu.memory_space<vmem>>, vector<32x16xbf16>
    %c0_1 = arith.constant 0 : index
    %c0_2 = arith.constant 0 : index
    %1 = vector.load %arg1[%c0_1, %c0_2] : memref<16x128xbf16, #tpu.memory_space<vmem>>, vector<16x128xbf16>
    %cst = arith.constant dense<0.000000e+00> : vector<32x128xf32>
    %2 = tpu.matmul %0, %1, %cst {dimension_numbers = #tpu.dot_dimension_numbers<[1], [0], [0], [1], [0, 0, 1, 1], [], []>} : vector<32x16xbf16>, vector<16x128xbf16>, vector<32x128xf32> -> vector<32x128xf32>
    %c0_3 = arith.constant 0 : index
    %c0_4 = arith.constant 0 : index
    %3 = vector.load %arg3[%c0_3, %c0_4] : memref<32x1xf32, #tpu.memory_space<vmem>>, vector<32x1xf32>
    %4 = vector.broadcast %3 : vector<32x1xf32> to vector<32x128xf32>
    %5 = arith.addf %2, %4 : vector<32x128xf32>
    %cst_5 = arith.constant 0.000000e+00 : f32
    %6 = vector.broadcast %cst_5 : f32 to vector<32x128xf32>
    %7 = arith.maximumf %5, %6 : vector<32x128xf32>
    %8 = arith.truncf %7 : vector<32x128xf32> to vector<32x128xbf16>
    %c0_6 = arith.constant 0 : index
    %c0_7 = arith.constant 0 : index
    %9 = vector.load %arg4[%c0_6, %c0_7] : memref<32x32xbf16, #tpu.memory_space<vmem>>, vector<32x32xbf16>
    %cst_8 = arith.constant dense<0.000000e+00> : vector<32x128xf32>
    %10 = tpu.matmul %9, %8, %cst_8 {dimension_numbers = #tpu.dot_dimension_numbers<[1], [0], [0], [1], [0, 0, 1, 1], [], []>} : vector<32x32xbf16>, vector<32x128xbf16>, vector<32x128xf32> -> vector<32x128xf32>
    %c0_9 = arith.constant 0 : index
    %c0_10 = arith.constant 0 : index
    %11 = vector.load %arg5[%c0_9, %c0_10] : memref<32x1xf32, #tpu.memory_space<vmem>>, vector<32x1xf32>
    %12 = vector.broadcast %11 : vector<32x1xf32> to vector<32x128xf32>
    %13 = arith.addf %10, %12 : vector<32x128xf32>
    %c0_11 = arith.constant 0 : index
    %c0_12 = arith.constant 0 : index
    %14 = vector.load %arg6[%c0_11, %c0_12] : memref<32x128xf32, #tpu.memory_space<vmem>>, vector<32x128xf32>
    tpu.vector_store %arg6[%c0_11, %c0_12], %13 {strides = array<i32>} : memref<32x128xf32, #tpu.memory_space<vmem>>, vector<32x128xf32>,
    return
  }
  func.func @transform_0(%arg0: i32) -> (i32, i32) {
    %c0_i32 = arith.constant 0 : i32
    %c0_i32_0 = arith.constant 0 : i32
    return %c0_i32, %arg0 : i32, i32
  }
  func.func @transform_1(%arg0: i32) -> (i32, i32) {
    %c0_i32 = arith.constant 0 : i32
    %c0_i32_0 = arith.constant 0 : i32
    %c0_i32_1 = arith.constant 0 : i32
    return %c0_i32, %c0_i32_0 : i32, i32
  }
  func.func @transform_2(%arg0: i32) -> (i32, i32) {
    %c0_i32 = arith.constant 0 : i32
    %c0_i32_0 = arith.constant 0 : i32
    %c0_i32_1 = arith.constant 0 : i32
    return %c0_i32, %c0_i32_0 : i32, i32
  }
  func.func @transform_3(%arg0: i32) -> (i32, i32) {
    %c0_i32 = arith.constant 0 : i32
    %c0_i32_0 = arith.constant 0 : i32
    %c0_i32_1 = arith.constant 0 : i32
    return %c0_i32, %c0_i32_0 : i32, i32
  }
  func.func @transform_4(%arg0: i32) -> (i32, i32) {
    %c0_i32 = arith.constant 0 : i32
    %c0_i32_0 = arith.constant 0 : i32
    %c0_i32_1 = arith.constant 0 : i32
    return %c0_i32, %c0_i32_0 : i32, i32
  }
  func.func @transform_5(%arg0: i32) -> (i32, i32) {
    %c0_i32 = arith.constant 0 : i32
    %c0_i32_0 = arith.constant 0 : i32
    return %c0_i32, %arg0 : i32, i32
  }
}

</mosaic_0001>

<llo_original>
// kernel: tpu_custom_call.1
$region0: #{tpu_custom_call.1}
  #allocation0 [shape = 'u32[]', space=smem, size = 0x4, offset = 0x4, fixed_abs, tag = 'smem constant byte address 0x4 - core index']
  #allocation1 [shape = 'u32[144,128]{1,0:T(1,128)}', space=vmem, size = 0x12000, scoped, tag = 'internal scratch']
  %s0 = inlined_call_operand.vmem [shape: bf16[16,128], index: 0, kind: input, shape index: {}]
  %s1 = inlined_call_operand.vmem [shape: bf16[32,16], index: 1, kind: input, shape index: {}]
  %s2 = inlined_call_operand.vmem [shape: f32[32,1], index: 2, kind: input, shape index: {}]
  %s3 = inlined_call_operand.vmem [shape: bf16[32,32], index: 3, kind: input, shape index: {}]
  %s4 = inlined_call_operand.vmem [shape: f32[32,1], index: 4, kind: input, shape index: {}]
  %s5 = inlined_call_operand.hbm [shape: f32[32,128], index: 5, kind: output, shape index: {}]
  %s6 = sld [smem:[#allocation0]]
  $region30: #{tpu_custom_call.1} parent=0
    _
  %s8 = ssub.s32 1, %s6
  %s9 = scalar_select 0, %s8, %s6
  $region1: #{tpu_custom_call.1} parent=0
    #allocation2 [shape = 'u8[16384]{0}', space=vmem, size = 0x4000, scoped, tag = 'output window, operand 0, single buffered']
    #allocation3 [shape = 's32[1]{0}', space=sflag, size = 0x4, scoped, tag = 'scoped memory for tpu_custom_call.1']
    %10 = vsyncpa [#allocation3], 0
    // Predicated region
    $region2: #{tpu_custom_call.1} parent=1 // pred_check
      _
    $region3: #{tpu_custom_call.1} parent=1 // pred_check_branch
      %12 = sbr.rel (0) target = $region5
    $region4: #{tpu_custom_call.1} parent=1 // pred_region
      _
    $region5: #{tpu_custom_call.1} parent=1 // pred_fallthru
      _
    // Predicated region
    $region6: #{tpu_custom_call.1} parent=1 // pred_check
      _
    $region7: #{tpu_custom_call.1} parent=1 // pred_check_branch
      %14 = sbr.rel (0) target = $region9
    $region8: #{tpu_custom_call.1} parent=1 // pred_region
      _
    $region9: #{tpu_custom_call.1} parent=1 // pred_fallthru
      _
    // Predicated region
    $region10: #{tpu_custom_call.1} parent=1 // pred_check
      _
    $region11: #{tpu_custom_call.1} parent=1 // pred_check_branch
      %16 = sbr.rel (0) target = $region13
    $region12: #{tpu_custom_call.1} parent=1 // pred_region
      _
    $region13: #{tpu_custom_call.1} parent=1 // pred_fallthru
      _
    // Predicated region
    $region14: #{tpu_custom_call.1} parent=1 // pred_check
      _
    $region15: #{tpu_custom_call.1} parent=1 // pred_check_branch
      %18 = sbr.rel (0) target = $region17
    $region16: #{tpu_custom_call.1} parent=1 // pred_region
      _
    $region17: #{tpu_custom_call.1} parent=1 // pred_fallthru
      _
    // Predicated region
    $region18: #{tpu_custom_call.1} parent=1 // pred_check
      _
    $region19: #{tpu_custom_call.1} parent=1 // pred_check_branch
      %20 = sbr.rel (0) target = $region21
    $region20: #{tpu_custom_call.1} parent=1 // pred_region
      _
    $region21: #{tpu_custom_call.1} parent=1 // pred_fallthru
      _
    %v22 = vld [vmem:[%s1] sm:$0xf]
    %v23 = vld [vmem:[%s1 + $0x4] sm:$0xf]
    %v24 = vld [vmem:[%s1 + $0x8] sm:$0xf]
    %v25 = vld [vmem:[%s1 + $0xc] sm:$0xf]
    %v26 = vld [vmem:[%s0] sm:$0xf]
    %v27 = vld [vmem:[%s0 + $0x4] sm:$0xf]
    %v28 = vld [vmem:[%s2] sm:$0xff]
    %v29 = vld [vmem:[%s2 + $0x8] sm:$0xff]
    %v30 = vld [vmem:[%s2 + $0x10] sm:$0xff]
    %v31 = vld [vmem:[%s2 + $0x18] sm:$0xff]
    %33 = vset.pattern.permute.xlu0 0
    %34 = vperm.xlu0 %33, %v28
    %v35 = vpop.permute.xlu0 %34
    %38 = vset.pattern.permute.xlu0 0
    %39 = vperm.xlu0 %38, %v29
    %v40 = vpop.permute.xlu0 %39
    %43 = vset.pattern.permute.xlu0 0
    %44 = vperm.xlu0 %43, %v30
    %v45 = vpop.permute.xlu0 %44
    %48 = vset.pattern.permute.xlu0 0
    %49 = vperm.xlu0 %48, %v31
    %v50 = vpop.permute.xlu0 %49
    %v56 = vunpack.c.l.b16 %v22
    %v57 = vunpack.c.l.b16 %v23
    %v58 = vunpack.c.l.b16 %v24
    %v59 = vunpack.c.l.b16 %v25
    %v60 = vpack.c.b16 %v57, %v56
    %v61 = vpack.c.b16 %v59, %v58
    %v64 = vunpack.c.l.b16 %v26
    %v65 = vunpack.c.l.b16 %v27
    %v66 = vpack.c.b16 %v65, %v64
    %vm68 = vcmask 130048
    %v70 = vsel %vm68, %v60, 0
    %v73 = vsel %vm68, %v61, 0
    %75 = vmatprep.subr.bf16.mxu0 0
    %76 = vmatpush1.bf16.msra.mxu0 %v66
    %77 = vmatprep.subr.bf16.mxu0 0
    %78 = vmatpush1.bf16.msra.mxu0 0
    %79 = vmatprep.subr.bf16.mxu0 0
    %80 = vmatpush1.bf16.msra.mxu0 0
    %81 = vmatprep.subr.bf16.mxu0 0
    %82 = vmatpush1.bf16.msra.mxu0 0
    %83 = vmatprep.subr.bf16.mxu0 0
    %84 = vmatpush1.bf16.msra.mxu0 0
    %85 = vmatprep.subr.bf16.mxu0 0
    %86 = vmatpush1.bf16.msra.mxu0 0
    %87 = vmatprep.subr.bf16.mxu0 0
    %88 = vmatpush1.bf16.msra.mxu0 0
    %89 = vmatprep.subr.bf16.mxu0 0
    %90 = vmatpush1.bf16.msra.mxu0 0
    %91 = vmatprep.subr.bf16.mxu0 0
    %92 = vmatpush1.bf16.msra.mxu0 0
    %93 = vmatprep.subr.bf16.mxu0 0
    %94 = vmatpush1.bf16.msra.mxu0 0
    %95 = vmatprep.subr.bf16.mxu0 0
    %96 = vmatpush1.bf16.msra.mxu0 0
    %97 = vmatprep.subr.bf16.mxu0 0
    %98 = vmatpush1.bf16.msra.mxu0 0
    %99 = vmatprep.subr.bf16.mxu0 0
    %100 = vmatpush1.bf16.msra.mxu0 0
    %101 = vmatprep.subr.bf16.mxu0 0
    %102 = vmatpush1.bf16.msra.mxu0 0
    %103 = vmatprep.subr.bf16.mxu0 0
    %104 = vmatpush1.bf16.msra.mxu0 0
    %105 = vmatprep.subr.bf16.mxu0 0
    %106 = vmatpush1.bf16.msra.mxu0 0
    %107 = vmatprep.mubr.bf16.mxu0 0
    %108 = vmatmul.mubr.bf16.gmra.mrb[0].mxu0 %v70
    %v109 = vpop.f32.mrb[0].mxu0
    %v110 = vadd.f32 %v35, %v109
    %v111 = vpop.f32.mrb[0].mxu0
    %v112 = vpop.f32.mrb[0].mxu0
    %v113 = vadd.f32 %v40, %v112
    %v114 = vpop.f32.mrb[0].mxu0
    %115 = vmatprep.mubr.bf16.mxu0 0
    %116 = vmatmul.mubr.bf16.gmra.mrb[0].mxu0 %v73
    %v117 = vpop.f32.mrb[0].mxu0
    %v118 = vadd.f32 %v45, %v117
    %v119 = vpop.f32.mrb[0].mxu0
    %v120 = vpop.f32.mrb[0].mxu0
    %v121 = vadd.f32 %v50, %v120
    %v122 = vpop.f32.mrb[0].mxu0
    %123 = vdwg.mxu0
    %v124 = vmax.f32 %v110, 0.0
    %v125 = vmax.f32 %v113, 0.0
    %v126 = vmax.f32 %v118, 0.0
    %v127 = vmax.f32 %v121, 0.0
    %v128 = vpack.c.bf16 %v125, %v124
    %v129 = vpack.c.bf16 %v127, %v126
    %v130 = vld [vmem:[%s3] sm:$0xf]
    %v131 = vld [vmem:[%s3 + $0x4] sm:$0xf]
    %v132 = vld [vmem:[%s3 + $0x8] sm:$0xf]
    %v133 = vld [vmem:[%s3 + $0xc] sm:$0xf]
    %v134 = vld [vmem:[%s4] sm:$0xff]
    %v135 = vld [vmem:[%s4 + $0x8] sm:$0xff]
    %v136 = vld [vmem:[%s4 + $0x10] sm:$0xff]
    %v137 = vld [vmem:[%s4 + $0x18] sm:$0xff]
    %139 = vset.pattern.permute.xlu0 0
    %140 = vperm.xlu0 %139, %v134
    %v141 = vpop.permute.xlu0 %140
    %144 = vset.pattern.permute.xlu0 0
    %145 = vperm.xlu0 %144, %v135
    %v146 = vpop.permute.xlu0 %145
    %149 = vset.pattern.permute.xlu0 0
    %150 = vperm.xlu0 %149, %v136
    %v151 = vpop.permute.xlu0 %150
    %154 = vset.pattern.permute.xlu0 0
    %155 = vperm.xlu0 %154, %v137
    %v156 = vpop.permute.xlu0 %155
    %v162 = vunpack.c.l.b16 %v130
    %v163 = vunpack.c.l.b16 %v131
    %v164 = vunpack.c.l.b16 %v132
    %v165 = vunpack.c.l.b16 %v133
    %v166 = vpack.c.b16 %v163, %v162
    %v167 = vpack.c.b16 %v165, %v164
    %vm168 = vcmask 261120
    %v170 = vsel %vm168, %v166, 0
    %v173 = vsel %vm168, %v167, 0
    %175 = vmatprep.subr.bf16.mxu0 0
    %176 = vmatpush1.bf16.msra.mxu0 %v128
    %177 = vmatprep.subr.bf16.mxu0 0
    %178 = vmatpush1.bf16.msra.mxu0 %v129
    %179 = vmatprep.subr.bf16.mxu0 0
    %180 = vmatpush1.bf16.msra.mxu0 0
    %181 = vmatprep.subr.bf16.mxu0 0
    %182 = vmatpush1.bf16.msra.mxu0 0
    %183 = vmatprep.subr.bf16.mxu0 0
    %184 = vmatpush1.bf16.msra.mxu0 0
    %185 = vmatprep.subr.bf16.mxu0 0
    %186 = vmatpush1.bf16.msra.mxu0 0
    %187 = vmatprep.subr.bf16.mxu0 0
    %188 = vmatpush1.bf16.msra.mxu0 0
    %189 = vmatprep.subr.bf16.mxu0 0
    %190 = vmatpush1.bf16.msra.mxu0 0
    %191 = vmatprep.subr.bf16.mxu0 0
    %192 = vmatpush1.bf16.msra.mxu0 0
    %193 = vmatprep.subr.bf16.mxu0 0
    %194 = vmatpush1.bf16.msra.mxu0 0
    %195 = vmatprep.subr.bf16.mxu0 0
    %196 = vmatpush1.bf16.msra.mxu0 0
    %197 = vmatprep.subr.bf16.mxu0 0
    %198 = vmatpush1.bf16.msra.mxu0 0
    %199 = vmatprep.subr.bf16.mxu0 0
    %200 = vmatpush1.bf16.msra.mxu0 0
    %201 = vmatprep.subr.bf16.mxu0 0
    %202 = vmatpush1.bf16.msra.mxu0 0
    %203 = vmatprep.subr.bf16.mxu0 0
    %204 = vmatpush1.bf16.msra.mxu0 0
    %205 = vmatprep.subr.bf16.mxu0 0
    %206 = vmatpush1.bf16.msra.mxu0 0
    %207 = vmatprep.mubr.bf16.mxu0 0
    %208 = vmatmul.mubr.bf16.gmra.mrb[0].mxu0 %v170
    %v209 = vpop.f32.mrb[0].mxu0
    %v210 = vadd.f32 %v141, %v209
    %v211 = vpop.f32.mrb[0].mxu0
    %v212 = vpop.f32.mrb[0].mxu0
    %v213 = vadd.f32 %v146, %v212
    %v214 = vpop.f32.mrb[0].mxu0
    %215 = vmatprep.mubr.bf16.mxu0 0
    %216 = vmatmul.mubr.bf16.gmra.mrb[0].mxu0 %v173
    %v217 = vpop.f32.mrb[0].mxu0
    %v218 = vadd.f32 %v151, %v217
    %v219 = vpop.f32.mrb[0].mxu0
    %v220 = vpop.f32.mrb[0].mxu0
    %v221 = vadd.f32 %v156, %v220
    %v222 = vpop.f32.mrb[0].mxu0
    %223 = vdwg.mxu0
    %224 = vst [vmem:[#allocation2] sm:$0xff] %v210
    %225 = vst [vmem:[#allocation2 + $0x8] sm:$0xff] %v213
    %226 = vst [vmem:[#allocation2 + $0x10] sm:$0xff] %v218
    %227 = vst [vmem:[#allocation2 + $0x18] sm:$0xff] %v221
    // Predicated region
    $region22: #{tpu_custom_call.1} parent=1 // pred_check
      _
    $region23: #{tpu_custom_call.1} parent=1 // pred_check_branch
      %229 = sbr.rel (0) target = $region25
    $region24: #{tpu_custom_call.1} parent=1 // pred_region
      %s231 = ssub.s32 512, 512
      %232 = vsyncadd [#allocation3], %s231
      %s233 = sshll.u32 [#allocation2], 4
      %s234 = int_to_ptr.vmem [resolvable:$true] %s233
      %239 = dma.vmem_to_hbm [thread:$0]  %s234, 512, %s5, [#allocation3], 128, 128, 8
    $region25: #{tpu_custom_call.1} parent=1 // pred_fallthru
      _
    // Predicated region
    $region26: #{tpu_custom_call.1} parent=1 // pred_check
      _
    $region27: #{tpu_custom_call.1} parent=1 // pred_check_branch
      %241 = sbr.rel (0) target = $region29
    $region28: #{tpu_custom_call.1} parent=1 // pred_region
      %242 = dma.done [#allocation3], 512
    $region29: #{tpu_custom_call.1} parent=1 // pred_fallthru
      _
    %243 = vsyncpa [#allocation3], 1

</llo_original>
